<compile_context>
chip_gen: v7x
topology: tpu7x:2x2x1
jax: 0.10.0
libtpu: 0.0.40
codegen_flags: <defaults>
</compile_context>

<pallas_src>
import jax
import jax.numpy as jnp
from jax.experimental import pallas as pl
from jax.experimental.pallas import tpu as pltpu


def _round_up(x, m):
    return ((x + m - 1) // m) * m


def _pad2(a, rows, cols):
    return jnp.pad(a, ((0, rows - a.shape[0]), (0, cols - a.shape[1])))


def _gcn_propagate_kernel(kidx_ref, kcnt_ref, adj_ref, sup_ref, b_ref, o_ref):
    """One GCN propagation step: o = leaky_relu(adj @ sup + b, 0.25).

    Grid = (row_tile i, reduction tile k).  o_ref's index map ignores k, so it
    stays resident in VMEM for the whole reduction and is used directly as the
    f32 accumulator.
    """
    i = pl.program_id(0)
    k = pl.program_id(1)
    nk = pl.num_programs(1)

    @pl.when(k == 0)
    def _():
        o_ref[...] = jnp.zeros_like(o_ref)

    # Only the first kcnt[i] k-steps carry a *new* nonzero adj tile; past that
    # the index_map repeats the last tile (no fresh DMA) and we skip the dot.
    @pl.when(k < kcnt_ref[i])
    def _():
        o_ref[...] += jnp.dot(adj_ref[...], sup_ref[...],
                              preferred_element_type=jnp.float32)

    @pl.when(k == nk - 1)
    def _():
        z = o_ref[...] + b_ref[...]
        o_ref[...] = jnp.where(z >= 0.0, z, 0.25 * z)


def _vmem_limit_bytes(tile, f_p, compute_dtype):
    isz = jnp.dtype(compute_dtype).itemsize
    est = (2 * tile * tile * isz        # adj tile (double-buffered)
           + 2 * tile * f_p * isz       # support tile (double-buffered)
           + 2 * tile * f_p * 4         # output / accumulator block
           + 2 * f_p * 4)               # bias
    try:
        cap = int(pltpu.get_tpu_info().vmem_capacity_bytes)
    except Exception:
        cap = 64 * 1024 * 1024          # conservative (v7x per-TC) fallback
    headroom = max(8 * 1024 * 1024, cap // 8)
    return int(min(max(4 * est, 32 * 1024 * 1024), cap - headroom))


def _tile_sparsity_map(adj_p, tile):
    """Per-(row-tile, col-tile) nonzero map of adj, compacted per row.

    kidx_flat[i*nt + k] is the k-th nonzero column tile of row tile i (entries
    past kcnt[i] repeat the last valid index so no new DMA is issued); kcnt[i]
    is the number of nonzero column tiles for row tile i.
    """
    n_p = adj_p.shape[0]
    nt = n_p // tile
    blocks = (adj_p != 0.0).reshape(nt, tile, nt, tile).any(axis=(1, 3))
    kcnt = blocks.sum(axis=1).astype(jnp.int32)
    # Sort key pushes zero tiles after nonzero tiles, both in ascending column
    # order (no reliance on argsort stability).
    col = jnp.arange(nt, dtype=jnp.int32)
    key = jnp.where(blocks, col[None, :], col[None, :] + nt)
    order = jnp.argsort(key, axis=1).astype(jnp.int32)
    kpos = jnp.minimum(col[None, :], jnp.maximum(kcnt - 1, 0)[:, None])
    kidx = jnp.take_along_axis(order, kpos, axis=1)
    return kidx.reshape(-1).astype(jnp.int32), kcnt


def _gcn_propagate(adj_c, sup_c, bias_p, kidx_flat, kcnt, *, tile):
    """adj_c: (n_p, n_p), sup_c: (n_p, f_p), bias_p: (1, f_p) f32 -> (n_p, f_p) f32."""
    n_p = adj_c.shape[0]
    f_p = sup_c.shape[1]
    nt = n_p // tile

    grid_spec = pltpu.PrefetchScalarGridSpec(
        num_scalar_prefetch=2,
        grid=(nt, nt),
        in_specs=[
            # adj tile (row i, compacted column index) -- zero tiles skipped.
            pl.BlockSpec((tile, tile),
                         lambda i, k, kidx, kcnt: (i, kidx[i * nt + k])),
            # matching support row-block.
            pl.BlockSpec((tile, f_p),
                         lambda i, k, kidx, kcnt: (kidx[i * nt + k], 0)),
            # bias (grid-invariant, tiny).
            pl.BlockSpec((1, f_p), lambda i, k, kidx, kcnt: (0, 0)),
        ],
        out_specs=pl.BlockSpec((tile, f_p), lambda i, k, kidx, kcnt: (i, 0)),
    )

    return pl.pallas_call(
        _gcn_propagate_kernel,
        grid_spec=grid_spec,
        out_shape=jax.ShapeDtypeStruct((n_p, f_p), jnp.float32),
        compiler_params=pltpu.CompilerParams(
            # Row tiles are fully independent -> megacore / dual-TC sharding.
            dimension_semantics=("parallel", "arbitrary"),
            vmem_limit_bytes=_vmem_limit_bytes(tile, f_p, sup_c.dtype),
        ),
    )(kidx_flat, kcnt, adj_c, sup_c, bias_p)


def encoder_forward(x, adj, params, *, tile=None, compute_dtype=jnp.bfloat16):
    """Encoder.forward (eval mode).

    compute_dtype controls the streamed adj / support precision inside the
    kernel (accumulation is always f32); pass jnp.float32 for numerics that
    match the f32 PyTorch reference exactly.
    """
    x = jnp.asarray(x, jnp.float32)
    adj = jnp.asarray(adj, jnp.float32)
    w1, b1, w2, b2 = params["w1"], params["b1"], params["w2"], params["b2"]

    n, fin = x.shape
    hid = w1.shape[1]
    fout = w2.shape[1]

    # Lane-dense padding: feature dims to 128, N to a multiple of the adj tile.
    fin_p = _round_up(fin, 128)
    hid_p = _round_up(hid, 128)
    fout_p = _round_up(fout, 128)
    if tile is None:
        tile = min(512, _round_up(n, 128))   # large tiles hide per-step overhead
    assert tile % 128 == 0
    n_p = _round_up(n, tile)

    x_p = _pad2(x, n_p, fin_p)
    adj_p = _pad2(adj, n_p, n_p)
    w1_p = _pad2(w1, fin_p, hid_p)
    w2_p = _pad2(w2, hid_p, fout_p)
    b1_p = jnp.pad(b1, (0, hid_p - hid)).reshape(1, hid_p).astype(jnp.float32)
    b2_p = jnp.pad(b2, (0, fout_p - fout)).reshape(1, fout_p).astype(jnp.float32)

    # Adjacency tile-sparsity map (shared by both layers) + bf16 stream copy.
    kidx_flat, kcnt = _tile_sparsity_map(adj_p, tile)
    adj_c = adj_p.astype(compute_dtype)

    # Layer 1: support = x @ W1 (small XLA dot), then propagate in the kernel.
    sup1 = jnp.dot(x_p, w1_p, preferred_element_type=jnp.float32)
    z = _gcn_propagate(adj_c, sup1.astype(compute_dtype), b1_p,
                       kidx_flat, kcnt, tile=tile)
    # TODO(synk): F.dropout with training=True uses PyTorch's RNG; eval-mode
    #             dropout (training=False) is the identity, which is implemented.

    # Layer 2.
    sup2 = jnp.dot(z, w2_p, preferred_element_type=jnp.float32)
    out_p = _gcn_propagate(adj_c, sup2.astype(compute_dtype), b2_p,
                           kidx_flat, kcnt, tile=tile)

    return out_p[:n, :fout]


def init_encoder_params(key, in_channels, out_channels):
    """Deterministic xavier-normal weights, zero biases (matches __init__)."""
    k1, k2 = jax.random.split(key)
    hid = out_channels * 2

    def xavier_normal(k, fan_in, fan_out):
        std = (2.0 / (fan_in + fan_out)) ** 0.5
        return std * jax.random.normal(k, (fan_in, fan_out), dtype=jnp.float32)

    return {
        "w1": xavier_normal(k1, in_channels, hid),
        "b1": jnp.zeros((hid,), jnp.float32),
        "w2": xavier_normal(k2, hid, out_channels),
        "b2": jnp.zeros((out_channels,), jnp.float32),
    }


if __name__ == "__main__":
    key = jax.random.PRNGKey(0)
    k_x, k_a, k_p = jax.random.split(key, 3)

    N = 16            # number of graph nodes
    IN_CH = 8         # in_channels
    OUT_CH = 4        # out_channels  (hidden = 2 * out_channels = 8)

    x = jax.random.normal(k_x, (N, IN_CH), dtype=jnp.float32)

    # Simple symmetric normalized adjacency (dense stand-in for sparse adj).
    a = (jax.random.uniform(k_a, (N, N)) < 0.3).astype(jnp.float32)
    a = jnp.maximum(a, a.T) + jnp.eye(N, dtype=jnp.float32)
    deg = jnp.sum(a, axis=1, keepdims=True)
    adj = a / deg

    params = init_encoder_params(k_p, IN_CH, OUT_CH)

    # Pure-JAX reference.
    def ref(x, adj, p):
        z = adj @ (x @ p["w1"]) + p["b1"]
        z = jnp.where(z >= 0, z, 0.25 * z)
        z = adj @ (z @ p["w2"]) + p["b2"]
        return jnp.where(z >= 0, z, 0.25 * z)

    expected = ref(x, adj, params)

    # Exact f32 streaming path -- tight tolerance.
    out_f32 = jax.block_until_ready(
        encoder_forward(x, adj, params, compute_dtype=jnp.float32))
    assert out_f32.shape == (N, OUT_CH)
    assert jnp.allclose(out_f32, expected, atol=1e-4, rtol=1e-4), (
        float(jnp.max(jnp.abs(out_f32 - expected))))

    # Default bf16-streamed path (f32 accumulation) -- relative-error check.
    out_bf16 = jax.block_until_ready(encoder_forward(x, adj, params))
    assert out_bf16.shape == (N, OUT_CH)
    rel = float(jnp.linalg.norm(out_bf16 - expected)
                / (jnp.linalg.norm(expected) + 1e-8))
    assert rel < 3e-2, rel

    print("KERNEL_OK")
</pallas_src>

<mosaic_0001>
module attributes {stable_mosaic.version = 11 : i64} {
  func.func @_gcn_propagate_kernel(%arg0: i32, %arg1: i32, %arg2: memref<1xi32, #tpu.memory_space<smem>>, %arg3: memref<1xi32, #tpu.memory_space<smem>>, %arg4: memref<128x128xf32, #tpu.memory_space<vmem>>, %arg5: memref<128x128xf32, #tpu.memory_space<vmem>>, %arg6: memref<1x128xf32, #tpu.memory_space<vmem>>, %arg7: memref<128x128xf32, #tpu.memory_space<vmem>>) attributes {dimension_semantics = [#tpu.dimension_semantics<parallel>, #tpu.dimension_semantics<arbitrary>], iteration_bounds = array<i64: 1, 1>, scalar_prefetch = 2 : i64, scratch_operands = 0 : i64, tpu.core_type = #tpu.core_type<tc>, window_params = [{transform_indices = @transform_0, window_bounds = array<i64: 128, 128>}, {transform_indices = @transform_1, window_bounds = array<i64: 128, 128>}, {pipeline_mode = #tpu.pipeline_mode<synchronous>, transform_indices = @transform_2, window_bounds = array<i64: 1, 128>}, {transform_indices = @transform_3, window_bounds = array<i64: 128, 128>}]} {
    %c0_i32 = arith.constant 0 : i32
    %0 = arith.cmpi eq, %arg1, %c0_i32 : i32
    %1 = arith.extui %0 : i1 to i32
    %c0_i32_0 = arith.constant 0 : i32
    %2 = arith.cmpi ne, %1, %c0_i32_0 : i32
    scf.if %2 {
      %cst = arith.constant 0.000000e+00 : f32
      %11 = vector.broadcast %cst : f32 to vector<128x128xf32>
      %c0 = arith.constant 0 : index
      %c0_4 = arith.constant 0 : index
      %12 = vector.load %arg7[%c0, %c0_4] : memref<128x128xf32, #tpu.memory_space<vmem>>, vector<128x128xf32>
      tpu.vector_store %arg7[%c0, %c0_4], %11 {strides = array<i32>} : memref<128x128xf32, #tpu.memory_space<vmem>>, vector<128x128xf32>,
    } else {
    }
    %3 = arith.index_cast %arg0 : i32 to index
    %4 = memref.load %arg3[%3] : memref<1xi32, #tpu.memory_space<smem>>
    %5 = arith.cmpi slt, %arg1, %4 : i32
    %6 = arith.extui %5 : i1 to i32
    %c0_i32_1 = arith.constant 0 : i32
    %7 = arith.cmpi ne, %6, %c0_i32_1 : i32
    scf.if %7 {
      %c0 = arith.constant 0 : index
      %c0_4 = arith.constant 0 : index
      %11 = vector.load %arg7[%c0, %c0_4] : memref<128x128xf32, #tpu.memory_space<vmem>>, vector<128x128xf32>
      %c0_5 = arith.constant 0 : index
      %c0_6 = arith.constant 0 : index
      %12 = vector.load %arg4[%c0_5, %c0_6] : memref<128x128xf32, #tpu.memory_space<vmem>>, vector<128x128xf32>
      %c0_7 = arith.constant 0 : index
      %c0_8 = arith.constant 0 : index
      %13 = vector.load %arg5[%c0_7, %c0_8] : memref<128x128xf32, #tpu.memory_space<vmem>>, vector<128x128xf32>
      %cst = arith.constant dense<0.000000e+00> : vector<128x128xf32>
      %14 = tpu.matmul %12, %13, %cst {dimension_numbers = #tpu.dot_dimension_numbers<[1], [0], [0], [1], [0, 0, 1, 1], [], []>} : vector<128x128xf32>, vector<128x128xf32>, vector<128x128xf32> -> vector<128x128xf32>
      %15 = arith.addf %11, %14 : vector<128x128xf32>
      %c0_9 = arith.constant 0 : index
      %c0_10 = arith.constant 0 : index
      %16 = vector.load %arg7[%c0_9, %c0_10] : memref<128x128xf32, #tpu.memory_space<vmem>>, vector<128x128xf32>
      tpu.vector_store %arg7[%c0_9, %c0_10], %15 {strides = array<i32>} : memref<128x128xf32, #tpu.memory_space<vmem>>, vector<128x128xf32>,
    } else {
    }
    %c0_i32_2 = arith.constant 0 : i32
    %8 = arith.cmpi eq, %arg1, %c0_i32_2 : i32
    %9 = arith.extui %8 : i1 to i32
    %c0_i32_3 = arith.constant 0 : i32
    %10 = arith.cmpi ne, %9, %c0_i32_3 : i32
    scf.if %10 {
      %c0 = arith.constant 0 : index
      %c0_4 = arith.constant 0 : index
      %11 = vector.load %arg7[%c0, %c0_4] : memref<128x128xf32, #tpu.memory_space<vmem>>, vector<128x128xf32>
      %c0_5 = arith.constant 0 : index
      %c0_6 = arith.constant 0 : index
      %12 = vector.load %arg6[%c0_5, %c0_6] : memref<1x128xf32, #tpu.memory_space<vmem>>, vector<1x128xf32>
      %13 = vector.broadcast %12 : vector<1x128xf32> to vector<128x128xf32>
      %14 = arith.addf %11, %13 : vector<128x128xf32>
      %cst = arith.constant 0.000000e+00 : f32
      %15 = vector.broadcast %cst : f32 to vector<128x128xf32>
      %16 = arith.cmpf oge, %14, %15 : vector<128x128xf32>
      %cst_7 = arith.constant 2.500000e-01 : f32
      %17 = vector.broadcast %cst_7 : f32 to vector<128x128xf32>
      %18 = arith.mulf %17, %14 : vector<128x128xf32>
      %19 = arith.select %16, %14, %18 : vector<128x128xi1>, vector<128x128xf32>
      %c0_8 = arith.constant 0 : index
      %c0_9 = arith.constant 0 : index
      %20 = vector.load %arg7[%c0_8, %c0_9] : memref<128x128xf32, #tpu.memory_space<vmem>>, vector<128x128xf32>
      tpu.vector_store %arg7[%c0_8, %c0_9], %19 {strides = array<i32>} : memref<128x128xf32, #tpu.memory_space<vmem>>, vector<128x128xf32>,
    } else {
    }
    return
  }
  func.func @transform_0(%arg0: i32, %arg1: i32, %arg2: memref<1xi32, #tpu.memory_space<smem>>, %arg3: memref<1xi32, #tpu.memory_space<smem>>) -> (i32, i32) {
    %c1_i32 = arith.constant 1 : i32
    %0 = arith.muli %arg0, %c1_i32 : i32
    %1 = arith.addi %0, %arg1 : i32
    %2 = arith.index_cast %1 : i32 to index
    %3 = memref.load %arg2[%2] : memref<1xi32, #tpu.memory_space<smem>>
    %c0_i32 = arith.constant 0 : i32
    return %arg0, %3 : i32, i32
  }
  func.func @transform_1(%arg0: i32, %arg1: i32, %arg2: memref<1xi32, #tpu.memory_space<smem>>, %arg3: memref<1xi32, #tpu.memory_space<smem>>) -> (i32, i32) {
    %c1_i32 = arith.constant 1 : i32
    %0 = arith.muli %arg0, %c1_i32 : i32
    %1 = arith.addi %0, %arg1 : i32
    %2 = arith.index_cast %1 : i32 to index
    %3 = memref.load %arg2[%2] : memref<1xi32, #tpu.memory_space<smem>>
    %c0_i32 = arith.constant 0 : i32
    %c0_i32_0 = arith.constant 0 : i32
    return %3, %c0_i32 : i32, i32
  }
  func.func @transform_2(%arg0: i32, %arg1: i32, %arg2: memref<1xi32, #tpu.memory_space<smem>>, %arg3: memref<1xi32, #tpu.memory_space<smem>>) -> (i32, i32) {
    %c0_i32 = arith.constant 0 : i32
    %c0_i32_0 = arith.constant 0 : i32
    %c0_i32_1 = arith.constant 0 : i32
    return %c0_i32, %c0_i32_0 : i32, i32
  }
  func.func @transform_3(%arg0: i32, %arg1: i32, %arg2: memref<1xi32, #tpu.memory_space<smem>>, %arg3: memref<1xi32, #tpu.memory_space<smem>>) -> (i32, i32) {
    %c0_i32 = arith.constant 0 : i32
    %c0_i32_0 = arith.constant 0 : i32
    return %arg0, %c0_i32 : i32, i32
  }
}

</mosaic_0001>

<llo_original>
// kernel: tpu_custom_call.1
$region0: #{tpu_custom_call.1}
  #allocation0 [shape = 'u32[]', space=smem, size = 0x4, offset = 0x4, fixed_abs, tag = 'smem constant byte address 0x4 - core index']
  #allocation1 [shape = 'u32[144,128]{1,0:T(1,128)}', space=vmem, size = 0x12000, scoped, tag = 'internal scratch']
  #allocation2 [shape = 's32[1]{0}', space=sflag, size = 0x4, scoped, tag = 'scoped memory for tpu_custom_call.1']
  #allocation3 [shape = 's32[1]{0:T(128)S(6)}', space=smem, size = 0x200, scoped, tag = 'prefetched SMEM operand 0']
  #allocation4 [shape = 's32[1]{0:T(128)S(6)}', space=smem, size = 0x200, scoped, tag = 'prefetched SMEM operand 1']
  %s0 = inlined_call_operand.<no memory space> [shape: s32[1], index: 0, kind: input, shape index: {}]
  %s1 = inlined_call_operand.<no memory space> [shape: s32[1], index: 1, kind: input, shape index: {}]
  %s2 = inlined_call_operand.hbm [shape: f32[128,128], index: 2, kind: input, shape index: {}]
  %s3 = inlined_call_operand.hbm [shape: f32[128,128], index: 3, kind: input, shape index: {}]
  %s4 = inlined_call_operand.vmem [shape: f32[1,128], index: 4, kind: input, shape index: {}]
  %s5 = inlined_call_operand.hbm [shape: f32[128,128], index: 5, kind: output, shape index: {}]
  %s6 = sld [smem:[#allocation0]]
  $region42: #{tpu_custom_call.1} parent=0
    _
  %s8 = ssub.s32 1, %s6
  %s9 = scalar_select 0, %s8, %s6
  %10 = sst [smem:[#allocation3]] %s0
  %11 = sst [smem:[#allocation4]] %s1
  $region1: #{tpu_custom_call.1} parent=0
    #allocation5 [shape = 'u8[65536]{0}', space=vmem, size = 0x10000, scoped, tag = 'input window, operand 2, single buffered']
    #allocation6 [shape = 's32[1]{0}', space=sflag, size = 0x4, scoped, tag = 'scoped memory for tpu_custom_call.1']
    #allocation7 [shape = 's32[1]{0}', space=sflag, size = 0x4, scoped, tag = 'scoped memory for tpu_custom_call.1']
    #allocation8 [shape = 'u8[65536]{0}', space=vmem, size = 0x10000, scoped, tag = 'input window, operand 3, single buffered']
    #allocation9 [shape = 's32[1]{0}', space=sflag, size = 0x4, scoped, tag = 'scoped memory for tpu_custom_call.1']
    #allocation10 [shape = 'u8[65536]{0}', space=vmem, size = 0x10000, scoped, tag = 'output window, operand 0, single buffered']
    %12 = vsyncpa [#allocation6], 0
    %13 = vsyncpa [#allocation9], 0
    %14 = vsyncpa [#allocation7], 0
    // Predicated region
    $region2: #{tpu_custom_call.1} parent=1 // pred_check
      _
    $region3: #{tpu_custom_call.1} parent=1 // pred_check_branch
      %16 = sbr.rel (0) target = $region5
    $region4: #{tpu_custom_call.1} parent=1 // pred_region
      %s17 = sadd.s32 0, 0
      %s18 = sld [smem:[#allocation3 + %s17]]
      %s20 = ssub.s32 2048, 2048
      %21 = vsyncadd [#allocation6], %s20
      %s22 = smul.addr %s18, 128
      %s23 = scalar_lea.hbm %s2, %s22
      %s24 = sshll.u32 [#allocation5], 4
      %s25 = int_to_ptr.vmem [resolvable:$true] %s24
      %30 = dma.hbm_to_vmem [thread:$0]  %s23, 2048, %s25, [#allocation6], 128, 128, 8
    $region5: #{tpu_custom_call.1} parent=1 // pred_fallthru
      _
    // Predicated region
    $region6: #{tpu_custom_call.1} parent=1 // pred_check
      _
    $region7: #{tpu_custom_call.1} parent=1 // pred_check_branch
      %32 = sbr.rel (0) target = $region9
    $region8: #{tpu_custom_call.1} parent=1 // pred_region
      %s33 = sadd.s32 0, 0
      %s34 = sld [smem:[#allocation3 + %s33]]
      %s35 = smul.u32 16, %s34
      %s37 = ssub.s32 2048, 2048
      %38 = vsyncadd [#allocation9], %s37
      %s39 = smul.addr %s35, 128
      %s40 = scalar_lea.hbm %s3, %s39
      %s41 = sshll.u32 [#allocation8], 4
      %s42 = int_to_ptr.vmem [resolvable:$true] %s41
      %47 = dma.hbm_to_vmem [thread:$0]  %s40, 2048, %s42, [#allocation9], 128, 128, 8
    $region9: #{tpu_custom_call.1} parent=1 // pred_fallthru
      _
    // Predicated region
    $region10: #{tpu_custom_call.1} parent=1 // pred_check
      _
    $region11: #{tpu_custom_call.1} parent=1 // pred_check_branch
      %49 = sbr.rel (0) target = $region13
    $region12: #{tpu_custom_call.1} parent=1 // pred_region
      _
    $region13: #{tpu_custom_call.1} parent=1 // pred_fallthru
      _
    // Predicated region
    $region14: #{tpu_custom_call.1} parent=1 // pred_check
      _
    $region15: #{tpu_custom_call.1} parent=1 // pred_check_branch
      %51 = sbr.rel (0) target = $region17
    $region16: #{tpu_custom_call.1} parent=1 // pred_region
      %52 = dma.done [#allocation6], 2048
    $region17: #{tpu_custom_call.1} parent=1 // pred_fallthru
      _
    // Predicated region
    $region18: #{tpu_custom_call.1} parent=1 // pred_check
      _
    $region19: #{tpu_custom_call.1} parent=1 // pred_check_branch
      %54 = sbr.rel (0) target = $region21
    $region20: #{tpu_custom_call.1} parent=1 // pred_region
      %55 = dma.done [#allocation9], 2048
    $region21: #{tpu_custom_call.1} parent=1 // pred_fallthru
      _
    %s56 = sadd.s32 0, 0
    %s57 = sld [smem:[#allocation3 + %s56]]
    %s58 = sadd.s32 0, 0
    %s59 = sld [smem:[#allocation3 + %s58]]
    %s60 = smul.u32 16, %s59
    %p61 = scmp.eq.s32.totalorder 0, 0
    // Predicated region
    $region22: #{tpu_custom_call.1} parent=1 // pred_check
      %p62 = pneg %p61
    $region23: #{tpu_custom_call.1} parent=1 // pred_check_branch
      %64 = sbr.rel (%p62) target = $region25
    $region24: #{tpu_custom_call.1} parent=1 // pred_region
      %65 = vst [vmem:[#allocation10] sm:$0xff] 0.0
      %66 = vst [vmem:[#allocation10 + $0x8] sm:$0xff] 0.0
      %67 = vst [vmem:[#allocation10 + $0x10] sm:$0xff] 0.0
      %68 = vst [vmem:[#allocation10 + $0x18] sm:$0xff] 0.0
      %69 = vst [vmem:[#allocation10 + $0x20] sm:$0xff] 0.0
      %70 = vst [vmem:[#allocation10 + $0x28] sm:$0xff] 0.0
      %71 = vst [vmem:[#allocation10 + $0x30] sm:$0xff] 0.0
      %72 = vst [vmem:[#allocation10 + $0x38] sm:$0xff] 0.0
      %73 = vst [vmem:[#allocation10 + $0x40] sm:$0xff] 0.0
      %74 = vst [vmem:[#allocation10 + $0x48] sm:$0xff] 0.0
      %75 = vst [vmem:[#allocation10 + $0x50] sm:$0xff] 0.0
      %76 = vst [vmem:[#allocation10 + $0x58] sm:$0xff] 0.0
      %77 = vst [vmem:[#allocation10 + $0x60] sm:$0xff] 0.0
      %78 = vst [vmem:[#allocation10 + $0x68] sm:$0xff] 0.0
      %79 = vst [vmem:[#allocation10 + $0x70] sm:$0xff] 0.0
      %80 = vst [vmem:[#allocation10 + $0x78] sm:$0xff] 0.0
    $region25: #{tpu_custom_call.1} parent=1 // pred_fallthru
      _
    %s81 = sld [smem:[#allocation4]]
    %p82 = scmp.lt.s32.totalorder 0, %s81
    // Predicated region
    $region26: #{tpu_custom_call.1} parent=1 // pred_check
      %p83 = pneg %p82
    $region27: #{tpu_custom_call.1} parent=1 // pred_check_branch
      %85 = sbr.rel (%p83) target = $region29
    $region28: #{tpu_custom_call.1} parent=1 // pred_region
      %v86 = vld [vmem:[#allocation10] sm:$0xff]
      %v87 = vld [vmem:[#allocation10 + $0x8] sm:$0xff]
      %v88 = vld [vmem:[#allocation10 + $0x10] sm:$0xff]
      %v89 = vld [vmem:[#allocation10 + $0x18] sm:$0xff]
      %v90 = vld [vmem:[#allocation10 + $0x20] sm:$0xff]
      %v91 = vld [vmem:[#allocation10 + $0x28] sm:$0xff]
      %v92 = vld [vmem:[#allocation10 + $0x30] sm:$0xff]
      %v93 = vld [vmem:[#allocation10 + $0x38] sm:$0xff]
      %v94 = vld [vmem:[#allocation10 + $0x40] sm:$0xff]
      %v95 = vld [vmem:[#allocation10 + $0x48] sm:$0xff]
      %v96 = vld [vmem:[#allocation10 + $0x50] sm:$0xff]
      %v97 = vld [vmem:[#allocation10 + $0x58] sm:$0xff]
      %v98 = vld [vmem:[#allocation10 + $0x60] sm:$0xff]
      %v99 = vld [vmem:[#allocation10 + $0x68] sm:$0xff]
      %v100 = vld [vmem:[#allocation10 + $0x70] sm:$0xff]
      %v101 = vld [vmem:[#allocation10 + $0x78] sm:$0xff]
      %v102 = vld [vmem:[#allocation5] sm:$0xff]
      %v103 = vld [vmem:[#allocation5 + $0x8] sm:$0xff]
      %v104 = vld [vmem:[#allocation5 + $0x10] sm:$0xff]
      %v105 = vld [vmem:[#allocation5 + $0x18] sm:$0xff]
      %v106 = vld [vmem:[#allocation5 + $0x20] sm:$0xff]
      %v107 = vld [vmem:[#allocation5 + $0x28] sm:$0xff]
      %v108 = vld [vmem:[#allocation5 + $0x30] sm:$0xff]
      %v109 = vld [vmem:[#allocation5 + $0x38] sm:$0xff]
      %v110 = vld [vmem:[#allocation5 + $0x40] sm:$0xff]
      %v111 = vld [vmem:[#allocation5 + $0x48] sm:$0xff]
      %v112 = vld [vmem:[#allocation5 + $0x50] sm:$0xff]
      %v113 = vld [vmem:[#allocation5 + $0x58] sm:$0xff]
      %v114 = vld [vmem:[#allocation5 + $0x60] sm:$0xff]
      %v115 = vld [vmem:[#allocation5 + $0x68] sm:$0xff]
      %v116 = vld [vmem:[#allocation5 + $0x70] sm:$0xff]
      %v117 = vld [vmem:[#allocation5 + $0x78] sm:$0xff]
      %v118 = vld [vmem:[#allocation8] sm:$0xff]
      %v119 = vld [vmem:[#allocation8 + $0x8] sm:$0xff]
      %v120 = vld [vmem:[#allocation8 + $0x10] sm:$0xff]
      %v121 = vld [vmem:[#allocation8 + $0x18] sm:$0xff]
      %v122 = vld [vmem:[#allocation8 + $0x20] sm:$0xff]
      %v123 = vld [vmem:[#allocation8 + $0x28] sm:$0xff]
      %v124 = vld [vmem:[#allocation8 + $0x30] sm:$0xff]
      %v125 = vld [vmem:[#allocation8 + $0x38] sm:$0xff]
      %v126 = vld [vmem:[#allocation8 + $0x40] sm:$0xff]
      %v127 = vld [vmem:[#allocation8 + $0x48] sm:$0xff]
      %v128 = vld [vmem:[#allocation8 + $0x50] sm:$0xff]
      %v129 = vld [vmem:[#allocation8 + $0x58] sm:$0xff]
      %v130 = vld [vmem:[#allocation8 + $0x60] sm:$0xff]
      %v131 = vld [vmem:[#allocation8 + $0x68] sm:$0xff]
      %v132 = vld [vmem:[#allocation8 + $0x70] sm:$0xff]
      %v133 = vld [vmem:[#allocation8 + $0x78] sm:$0xff]
      %134 = vmatprep.subr.mxu0 0.0
      %135 = vmatpush1.msra.mxu0 %v118
      %136 = vmatprep.subr.mxu0 0.0
      %137 = vmatpush1.msra.mxu0 %v119
      %138 = vmatprep.subr.mxu0 0.0
      %139 = vmatpush1.msra.mxu0 %v120
      %140 = vmatprep.subr.mxu0 0.0
      %141 = vmatpush1.msra.mxu0 %v121
      %142 = vmatprep.subr.mxu0 0.0
      %143 = vmatpush1.msra.mxu0 %v122
      %144 = vmatprep.subr.mxu0 0.0
      %145 = vmatpush1.msra.mxu0 %v123
      %146 = vmatprep.subr.mxu0 0.0
      %147 = vmatpush1.msra.mxu0 %v124
      %148 = vmatprep.subr.mxu0 0.0
      %149 = vmatpush1.msra.mxu0 %v125
      %150 = vmatprep.subr.mxu0 0.0
      %151 = vmatpush1.msra.mxu0 %v126
      %152 = vmatprep.subr.mxu0 0.0
      %153 = vmatpush1.msra.mxu0 %v127
      %154 = vmatprep.subr.mxu0 0.0
      %155 = vmatpush1.msra.mxu0 %v128
      %156 = vmatprep.subr.mxu0 0.0
      %157 = vmatpush1.msra.mxu0 %v129
      %158 = vmatprep.subr.mxu0 0.0
      %159 = vmatpush1.msra.mxu0 %v130
      %160 = vmatprep.subr.mxu0 0.0
      %161 = vmatpush1.msra.mxu0 %v131
      %162 = vmatprep.subr.mxu0 0.0
      %163 = vmatpush1.msra.mxu0 %v132
      %164 = vmatprep.subr.mxu0 0.0
      %165 = vmatpush1.msra.mxu0 %v133
      %166 = vmatprep.subr.mxu0 0.0
      %167 = vmatpush1.msra.mxu0 0.0
      %168 = vmatprep.subr.mxu0 0.0
      %169 = vmatpush1.msra.mxu0 0.0
      %170 = vmatprep.subr.mxu0 0.0
      %171 = vmatpush1.msra.mxu0 0.0
      %172 = vmatprep.subr.mxu0 0.0
      %173 = vmatpush1.msra.mxu0 0.0
      %174 = vmatprep.subr.mxu0 0.0
      %175 = vmatpush1.msra.mxu0 0.0
      %176 = vmatprep.subr.mxu0 0.0
      %177 = vmatpush1.msra.mxu0 0.0
      %178 = vmatprep.subr.mxu0 0.0
      %179 = vmatpush1.msra.mxu0 0.0
      %180 = vmatprep.subr.mxu0 0.0
      %181 = vmatpush1.msra.mxu0 0.0
      %182 = vmatprep.subr.mxu0 0.0
      %183 = vmatpush1.msra.mxu0 0.0
      %184 = vmatprep.subr.mxu0 0.0
      %185 = vmatpush1.msra.mxu0 0.0
      %186 = vmatprep.subr.mxu0 0.0
      %187 = vmatpush1.msra.mxu0 0.0
      %188 = vmatprep.subr.mxu0 0.0
      %189 = vmatpush1.msra.mxu0 0.0
      %190 = vmatprep.subr.mxu0 0.0
      %191 = vmatpush1.msra.mxu0 0.0
      %192 = vmatprep.subr.mxu0 0.0
      %193 = vmatpush1.msra.mxu0 0.0
      %194 = vmatprep.subr.mxu0 0.0
      %195 = vmatpush1.msra.mxu0 0.0
      %196 = vmatprep.subr.mxu0 0.0
      %197 = vmatpush1.msra.mxu0 0.0
      %198 = vmatprep.mubr.f32.mxu0 0.0
      %199 = vmatmul.mubr.f32.gmra.mrb[0].mxu0 %v102
      %v200 = vpop.f32.mrb[0].mxu0
      %v201 = vadd.f32 0.0, %v200
      %v202 = vpop.f32.mrb[0].mxu0
      %203 = vmatprep.mubr.f32.mxu0 0.0
      %204 = vmatmul.mubr.f32.gmra.mrb[0].mxu0 %v103
      %v205 = vpop.f32.mrb[0].mxu0
      %v206 = vadd.f32 0.0, %v205
      %v207 = vpop.f32.mrb[0].mxu0
      %208 = vmatprep.mubr.f32.mxu0 0.0
      %209 = vmatmul.mubr.f32.gmra.mrb[0].mxu0 %v104
      %v210 = vpop.f32.mrb[0].mxu0
      %v211 = vadd.f32 0.0, %v210
      %v212 = vpop.f32.mrb[0].mxu0
      %213 = vmatprep.mubr.f32.mxu0 0.0
      %214 = vmatmul.mubr.f32.gmra.mrb[0].mxu0 %v105
      %v215 = vpop.f32.mrb[0].mxu0
      %v216 = vadd.f32 0.0, %v215
      %v217 = vpop.f32.mrb[0].mxu0
      %218 = vmatprep.mubr.f32.mxu0 0.0
      %219 = vmatmul.mubr.f32.gmra.mrb[0].mxu0 %v106
      %v220 = vpop.f32.mrb[0].mxu0
      %v221 = vadd.f32 0.0, %v220
      %v222 = vpop.f32.mrb[0].mxu0
      %223 = vmatprep.mubr.f32.mxu0 0.0
      %224 = vmatmul.mubr.f32.gmra.mrb[0].mxu0 %v107
      %v225 = vpop.f32.mrb[0].mxu0
      %v226 = vadd.f32 0.0, %v225
      %v227 = vpop.f32.mrb[0].mxu0
      %228 = vmatprep.mubr.f32.mxu0 0.0
      %229 = vmatmul.mubr.f32.gmra.mrb[0].mxu0 %v108
      %v230 = vpop.f32.mrb[0].mxu0
      %v231 = vadd.f32 0.0, %v230
      %v232 = vpop.f32.mrb[0].mxu0
      %233 = vmatprep.mubr.f32.mxu0 0.0
      %234 = vmatmul.mubr.f32.gmra.mrb[0].mxu0 %v109
      %v235 = vpop.f32.mrb[0].mxu0
      %v236 = vadd.f32 0.0, %v235
      %v237 = vpop.f32.mrb[0].mxu0
      %238 = vmatprep.mubr.f32.mxu0 0.0
      %239 = vmatmul.mubr.f32.gmra.mrb[0].mxu0 %v110
      %v240 = vpop.f32.mrb[0].mxu0
      %v241 = vadd.f32 0.0, %v240
      %v242 = vpop.f32.mrb[0].mxu0
      %243 = vmatprep.mubr.f32.mxu0 0.0
      %244 = vmatmul.mubr.f32.gmra.mrb[0].mxu0 %v111
      %v245 = vpop.f32.mrb[0].mxu0
      %v246 = vadd.f32 0.0, %v245
      %v247 = vpop.f32.mrb[0].mxu0
      %248 = vmatprep.mubr.f32.mxu0 0.0
      %249 = vmatmul.mubr.f32.gmra.mrb[0].mxu0 %v112
      %v250 = vpop.f32.mrb[0].mxu0
      %v251 = vadd.f32 0.0, %v250
      %v252 = vpop.f32.mrb[0].mxu0
      %253 = vmatprep.mubr.f32.mxu0 0.0
      %254 = vmatmul.mubr.f32.gmra.mrb[0].mxu0 %v113
      %v255 = vpop.f32.mrb[0].mxu0
      %v256 = vadd.f32 0.0, %v255
      %v257 = vpop.f32.mrb[0].mxu0
      %258 = vmatprep.mubr.f32.mxu0 0.0
      %259 = vmatmul.mubr.f32.gmra.mrb[0].mxu0 %v114
      %v260 = vpop.f32.mrb[0].mxu0
      %v261 = vadd.f32 0.0, %v260
      %v262 = vpop.f32.mrb[0].mxu0
      %263 = vmatprep.mubr.f32.mxu0 0.0
      %264 = vmatmul.mubr.f32.gmra.mrb[0].mxu0 %v115
      %v265 = vpop.f32.mrb[0].mxu0
      %v266 = vadd.f32 0.0, %v265
      %v267 = vpop.f32.mrb[0].mxu0
      %268 = vmatprep.mubr.f32.mxu0 0.0
      %269 = vmatmul.mubr.f32.gmra.mrb[0].mxu0 %v116
      %v270 = vpop.f32.mrb[0].mxu0
      %v271 = vadd.f32 0.0, %v270
      %v272 = vpop.f32.mrb[0].mxu0
      %273 = vmatprep.mubr.f32.mxu0 0.0
      %274 = vmatmul.mubr.f32.gmra.mrb[0].mxu0 %v117
      %v275 = vpop.f32.mrb[0].mxu0
      %v276 = vadd.f32 0.0, %v275
      %v277 = vpop.f32.mrb[0].mxu0
      %278 = vdwg.mxu0
      %v279 = vadd.f32 %v86, %v201
      %v280 = vadd.f32 %v87, %v206
      %v281 = vadd.f32 %v88, %v211
      %v282 = vadd.f32 %v89, %v216
      %v283 = vadd.f32 %v90, %v221
      %v284 = vadd.f32 %v91, %v226
      %v285 = vadd.f32 %v92, %v231
      %v286 = vadd.f32 %v93, %v236
      %v287 = vadd.f32 %v94, %v241
      %v288 = vadd.f32 %v95, %v246
      %v289 = vadd.f32 %v96, %v251
      %v290 = vadd.f32 %v97, %v256
      %v291 = vadd.f32 %v98, %v261
      %v292 = vadd.f32 %v99, %v266
      %v293 = vadd.f32 %v100, %v271
      %v294 = vadd.f32 %v101, %v276
      %295 = vst [vmem:[#allocation10] sm:$0xff] %v279
      %296 = vst [vmem:[#allocation10 + $0x8] sm:$0xff] %v280
      %297 = vst [vmem:[#allocation10 + $0x10] sm:$0xff] %v281
      %298 = vst [vmem:[#allocation10 + $0x18] sm:$0xff] %v282
      %299 = vst [vmem:[#allocation10 + $0x20] sm:$0xff] %v283
      %300 = vst [vmem:[#allocation10 + $0x28] sm:$0xff] %v284
      %301 = vst [vmem:[#allocation10 + $0x30] sm:$0xff] %v285
      %302 = vst [vmem:[#allocation10 + $0x38] sm:$0xff] %v286
      %303 = vst [vmem:[#allocation10 + $0x40] sm:$0xff] %v287
      %304 = vst [vmem:[#allocation10 + $0x48] sm:$0xff] %v288
      %305 = vst [vmem:[#allocation10 + $0x50] sm:$0xff] %v289
      %306 = vst [vmem:[#allocation10 + $0x58] sm:$0xff] %v290
      %307 = vst [vmem:[#allocation10 + $0x60] sm:$0xff] %v291
      %308 = vst [vmem:[#allocation10 + $0x68] sm:$0xff] %v292
      %309 = vst [vmem:[#allocation10 + $0x70] sm:$0xff] %v293
      %310 = vst [vmem:[#allocation10 + $0x78] sm:$0xff] %v294
    $region29: #{tpu_custom_call.1} parent=1 // pred_fallthru
      _
    // Predicated region
    $region30: #{tpu_custom_call.1} parent=1 // pred_check
      %p311 = pneg %p61
    $region31: #{tpu_custom_call.1} parent=1 // pred_check_branch
      %313 = sbr.rel (%p311) target = $region33
    $region32: #{tpu_custom_call.1} parent=1 // pred_region
      %v314 = vld [vmem:[#allocation10] sm:$0xff]
      %v315 = vld [vmem:[#allocation10 + $0x8] sm:$0xff]
      %v316 = vld [vmem:[#allocation10 + $0x10] sm:$0xff]
      %v317 = vld [vmem:[#allocation10 + $0x18] sm:$0xff]
      %v318 = vld [vmem:[#allocation10 + $0x20] sm:$0xff]
      %v319 = vld [vmem:[#allocation10 + $0x28] sm:$0xff]
      %v320 = vld [vmem:[#allocation10 + $0x30] sm:$0xff]
      %v321 = vld [vmem:[#allocation10 + $0x38] sm:$0xff]
      %v322 = vld [vmem:[#allocation10 + $0x40] sm:$0xff]
      %v323 = vld [vmem:[#allocation10 + $0x48] sm:$0xff]
      %v324 = vld [vmem:[#allocation10 + $0x50] sm:$0xff]
      %v325 = vld [vmem:[#allocation10 + $0x58] sm:$0xff]
      %v326 = vld [vmem:[#allocation10 + $0x60] sm:$0xff]
      %v327 = vld [vmem:[#allocation10 + $0x68] sm:$0xff]
      %v328 = vld [vmem:[#allocation10 + $0x70] sm:$0xff]
      %v329 = vld [vmem:[#allocation10 + $0x78] sm:$0xff]
      %v330 = vld [vmem:[%s4] sm:$0x1]
      %v332 = vlaneseq
      %v333 = vshrl.u32 %v332, 7
      %v334 = vsub.s32 0, %v333
      %v335 = vrot.slane %v330, %v334
      %v337 = vadd.f32 %v314, %v335
      %v338 = vadd.f32 %v315, %v335
      %v339 = vadd.f32 %v316, %v335
      %v340 = vadd.f32 %v317, %v335
      %v341 = vadd.f32 %v318, %v335
      %v342 = vadd.f32 %v319, %v335
      %v343 = vadd.f32 %v320, %v335
      %v344 = vadd.f32 %v321, %v335
      %v345 = vadd.f32 %v322, %v335
      %v346 = vadd.f32 %v323, %v335
      %v347 = vadd.f32 %v324, %v335
      %v348 = vadd.f32 %v325, %v335
      %v349 = vadd.f32 %v326, %v335
      %v350 = vadd.f32 %v327, %v335
      %v351 = vadd.f32 %v328, %v335
      %v352 = vadd.f32 %v329, %v335
      %vm353 = vcmp.ge.f32.partialorder %v337, 0.0
      %vm354 = vcmp.ge.f32.partialorder %v338, 0.0
      %vm355 = vcmp.ge.f32.partialorder %v339, 0.0
      %vm356 = vcmp.ge.f32.partialorder %v340, 0.0
      %vm357 = vcmp.ge.f32.partialorder %v341, 0.0
      %vm358 = vcmp.ge.f32.partialorder %v342, 0.0
      %vm359 = vcmp.ge.f32.partialorder %v343, 0.0
      %vm360 = vcmp.ge.f32.partialorder %v344, 0.0
      %vm361 = vcmp.ge.f32.partialorder %v345, 0.0
      %vm362 = vcmp.ge.f32.partialorder %v346, 0.0
      %vm363 = vcmp.ge.f32.partialorder %v347, 0.0
      %vm364 = vcmp.ge.f32.partialorder %v348, 0.0
      %vm365 = vcmp.ge.f32.partialorder %v349, 0.0
      %vm366 = vcmp.ge.f32.partialorder %v350, 0.0
      %vm367 = vcmp.ge.f32.partialorder %v351, 0.0
      %vm368 = vcmp.ge.f32.partialorder %v352, 0.0
      %v369 = vmul.f32 %v337, 0.25
      %v370 = vmul.f32 %v338, 0.25
      %v371 = vmul.f32 %v339, 0.25
      %v372 = vmul.f32 %v340, 0.25
      %v373 = vmul.f32 %v341, 0.25
      %v374 = vmul.f32 %v342, 0.25
      %v375 = vmul.f32 %v343, 0.25
      %v376 = vmul.f32 %v344, 0.25
      %v377 = vmul.f32 %v345, 0.25
      %v378 = vmul.f32 %v346, 0.25
      %v379 = vmul.f32 %v347, 0.25
      %v380 = vmul.f32 %v348, 0.25
      %v381 = vmul.f32 %v349, 0.25
      %v382 = vmul.f32 %v350, 0.25
      %v383 = vmul.f32 %v351, 0.25
      %v384 = vmul.f32 %v352, 0.25
      %v385 = vsel %vm353, %v337, %v369
      %v386 = vsel %vm354, %v338, %v370
      %v387 = vsel %vm355, %v339, %v371
      %v388 = vsel %vm356, %v340, %v372
      %v389 = vsel %vm357, %v341, %v373
      %v390 = vsel %vm358, %v342, %v374
      %v391 = vsel %vm359, %v343, %v375
      %v392 = vsel %vm360, %v344, %v376
      %v393 = vsel %vm361, %v345, %v377
      %v394 = vsel %vm362, %v346, %v378
      %v395 = vsel %vm363, %v347, %v379
      %v396 = vsel %vm364, %v348, %v380
      %v397 = vsel %vm365, %v349, %v381
      %v398 = vsel %vm366, %v350, %v382
      %v399 = vsel %vm367, %v351, %v383
      %v400 = vsel %vm368, %v352, %v384
      %401 = vst [vmem:[#allocation10] sm:$0xff] %v385
      %402 = vst [vmem:[#allocation10 + $0x8] sm:$0xff] %v386
      %403 = vst [vmem:[#allocation10 + $0x10] sm:$0xff] %v387
      %404 = vst [vmem:[#allocation10 + $0x18] sm:$0xff] %v388
      %405 = vst [vmem:[#allocation10 + $0x20] sm:$0xff] %v389
      %406 = vst [vmem:[#allocation10 + $0x28] sm:$0xff] %v390
      %407 = vst [vmem:[#allocation10 + $0x30] sm:$0xff] %v391
      %408 = vst [vmem:[#allocation10 + $0x38] sm:$0xff] %v392
      %409 = vst [vmem:[#allocation10 + $0x40] sm:$0xff] %v393
      %410 = vst [vmem:[#allocation10 + $0x48] sm:$0xff] %v394
      %411 = vst [vmem:[#allocation10 + $0x50] sm:$0xff] %v395
      %412 = vst [vmem:[#allocation10 + $0x58] sm:$0xff] %v396
      %413 = vst [vmem:[#allocation10 + $0x60] sm:$0xff] %v397
      %414 = vst [vmem:[#allocation10 + $0x68] sm:$0xff] %v398
      %415 = vst [vmem:[#allocation10 + $0x70] sm:$0xff] %v399
      %416 = vst [vmem:[#allocation10 + $0x78] sm:$0xff] %v400
    $region33: #{tpu_custom_call.1} parent=1 // pred_fallthru
      _
    // Predicated region
    $region34: #{tpu_custom_call.1} parent=1 // pred_check
      _
    $region35: #{tpu_custom_call.1} parent=1 // pred_check_branch
      %418 = sbr.rel (0) target = $region37
    $region36: #{tpu_custom_call.1} parent=1 // pred_region
      %s420 = ssub.s32 2048, 2048
      %421 = vsyncadd [#allocation7], %s420
      %s422 = sshll.u32 [#allocation10], 4
      %s423 = int_to_ptr.vmem [resolvable:$true] %s422
      %428 = dma.vmem_to_hbm [thread:$0]  %s423, 2048, %s5, [#allocation7], 128, 128, 8
    $region37: #{tpu_custom_call.1} parent=1 // pred_fallthru
      _
    // Predicated region
    $region38: #{tpu_custom_call.1} parent=1 // pred_check
      _
    $region39: #{tpu_custom_call.1} parent=1 // pred_check_branch
      %430 = sbr.rel (0) target = $region41
    $region40: #{tpu_custom_call.1} parent=1 // pred_region
      %431 = dma.done [#allocation7], 2048
    $region41: #{tpu_custom_call.1} parent=1 // pred_fallthru
      _
    %432 = vsyncpa [#allocation6], 1
    %433 = vsyncpa [#allocation9], 1
    %434 = vsyncpa [#allocation7], 1

</llo_original>
